<compile_context>
chip_gen: v7x
topology: tpu7x:2x2x1
jax: 0.10.0
libtpu: 0.0.40
codegen_flags: <defaults>
</compile_context>

<pallas_src>
import jax
import jax.numpy as jnp
from jax.experimental import pallas as pl
from jax.experimental.pallas import tpu as pltpu


D_IN, D_HID, D_OUT = 20, 256, 10


def _round_up(n, m):
    return (n + m - 1) // m * m


def mlp_kernel(x_ref, w1_ref, b1_ref, w2_ref, b2_ref, o_ref):
    # x_ref : (tile_b, 20) f32    w1_ref: (20, 256) bf16   b1_ref: (1, 256) f32
    # w2_ref: (256, 10)   bf16    b2_ref: (1, 10)   f32    o_ref : (tile_b, 10) f32
    xb = x_ref[...].astype(jnp.bfloat16)                 # in-kernel cast (no wrapper pass)
    h = jnp.dot(xb, w1_ref[...], preferred_element_type=jnp.float32)
    h = jnp.maximum(h + b1_ref[...], 0.0)                # f32 bias + ReLU on the VPU
    y = jnp.dot(h.astype(jnp.bfloat16), w2_ref[...],
                preferred_element_type=jnp.float32)
    o_ref[...] = (y + b2_ref[...]).astype(o_ref.dtype)   # narrow 10-lane output store


def _choose_tile_b(B):
    # Tiny batches: one sublane-packed tile (16 = bf16 sublane packing).
    if B <= 256:
        return max(16, _round_up(B, 16))
    # Otherwise aim for >= 2 grid steps so v7x's second TensorCore engages
    # (dimension_semantics=("parallel",)); tiles a multiple of 512 amortize the
    # ~0.35 us per-grid-step overhead; cap at 2048 so the double-buffered tiles
    # plus the (tile_b, 256) f32/bf16 hidden temporaries stay comfortably inside
    # v5e's 16 MiB scoped-VMEM default (v6e/v7x have more headroom).
    return int(min(2048, _round_up(pl.cdiv(B, 2), 512)))


def mlp_forward(x, w1, b1, w2, b2, *, tile_b=None):
    """x: (B, 20) f32 -> (B, 10) f32. Batch-tiled, fused two-matmul MLP."""
    B = x.shape[0]
    if tile_b is None:
        tile_b = _choose_tile_b(B)
    b_pad = _round_up(B, tile_b)
    if b_pad != B:
        # Batch-dim zero pad only; no feature-dim pad / cast pass over x.
        x = jnp.pad(x, ((0, b_pad - B), (0, 0)))

    # No-op casts if weights were already prepared in bf16 at init (hoisted).
    w1 = w1.astype(jnp.bfloat16)
    w2 = w2.astype(jnp.bfloat16)
    b1 = b1.astype(jnp.float32).reshape(1, D_HID)
    b2 = b2.astype(jnp.float32).reshape(1, D_OUT)

    grid = (b_pad // tile_b,)
    flops = 2 * b_pad * (D_IN * D_HID + D_HID * D_OUT)
    bytes_accessed = (b_pad * D_IN * 4          # x read (f32, unpadded features)
                      + w1.size * 2 + b1.size * 4
                      + w2.size * 2 + b2.size * 4
                      + b_pad * D_OUT * 4)      # narrow f32 output write

    out = pl.pallas_call(
        mlp_kernel,
        out_shape=jax.ShapeDtypeStruct((b_pad, D_OUT), jnp.float32),
        grid_spec=pltpu.PrefetchScalarGridSpec(
            num_scalar_prefetch=0,
            grid=grid,
            in_specs=[
                pl.BlockSpec((tile_b, D_IN), lambda i: (i, 0)),   # x: pipelined per tile
                pl.BlockSpec((D_IN, D_HID), lambda i: (0, 0)),    # w1: VMEM-resident
                pl.BlockSpec((1, D_HID), lambda i: (0, 0)),       # b1: resident
                pl.BlockSpec((D_HID, D_OUT), lambda i: (0, 0)),   # w2: resident
                pl.BlockSpec((1, D_OUT), lambda i: (0, 0)),       # b2: resident
            ],
            out_specs=pl.BlockSpec((tile_b, D_OUT), lambda i: (i, 0)),
        ),
        compiler_params=pltpu.CompilerParams(
            dimension_semantics=("parallel",),   # megacore split on v7x; no-op on v5e/v6e
        ),
        cost_estimate=pl.CostEstimate(
            flops=flops, transcendentals=0, bytes_accessed=bytes_accessed),
    )(x, w1, b1, w2, b2)

    return out if b_pad == B else out[:B]


def mlp_reference(x, w1, b1, w2, b2):
    """Pure-JAX reference with the kernel's bf16-MXU-input / f32-accumulate recipe."""
    xb = x.astype(jnp.bfloat16)
    h = jnp.dot(xb, w1.astype(jnp.bfloat16), preferred_element_type=jnp.float32)
    h = jnp.maximum(h + b1.astype(jnp.float32).reshape(1, D_HID), 0.0)
    y = jnp.dot(h.astype(jnp.bfloat16), w2.astype(jnp.bfloat16),
                preferred_element_type=jnp.float32)
    return y + b2.astype(jnp.float32).reshape(1, D_OUT)


def mlp_reference_f32(x, w1, b1, w2, b2):
    """Full-f32 reference (the kernel intentionally uses bf16 MXU inputs)."""
    h = jnp.maximum(
        jnp.dot(x, w1.astype(jnp.float32), preferred_element_type=jnp.float32)
        + b1.astype(jnp.float32).reshape(1, D_HID), 0.0)
    return (jnp.dot(h, w2.astype(jnp.float32), preferred_element_type=jnp.float32)
            + b2.astype(jnp.float32).reshape(1, D_OUT))


def init_params(key):
    """nn.Linear-style init (uniform +-1/sqrt(fan_in)). Weights stored as
    (in_features, out_features) == PyTorch weight.T, cast to bf16 once here so
    the per-call path does no weight prep work."""
    k1, k2, k3, k4 = jax.random.split(key, 4)
    bound1 = 1.0 / jnp.sqrt(20.0)
    bound2 = 1.0 / jnp.sqrt(256.0)
    w1 = jax.random.uniform(k1, (D_IN, D_HID), jnp.float32, -bound1, bound1)
    b1 = jax.random.uniform(k2, (1, D_HID), jnp.float32, -bound1, bound1)
    w2 = jax.random.uniform(k3, (D_HID, D_OUT), jnp.float32, -bound2, bound2)
    b2 = jax.random.uniform(k4, (1, D_OUT), jnp.float32, -bound2, bound2)
    return w1.astype(jnp.bfloat16), b1, w2.astype(jnp.bfloat16), b2


if __name__ == "__main__":
    key = jax.random.PRNGKey(0)
    kx, kp = jax.random.split(key)

    # Matches X = torch.rand(2, 20): batch=2, features=20, uniform [0, 1)
    x = jax.random.uniform(kx, (2, 20), jnp.float32)
    w1, b1, w2, b2 = init_params(kp)

    fwd = jax.jit(mlp_forward)
    out = jax.block_until_ready(fwd(x, w1, b1, w2, b2))

    ref = mlp_reference(x, w1, b1, w2, b2)
    assert out.shape == (2, 10)
    assert jnp.allclose(out, ref, atol=1e-3, rtol=1e-3), (
        f"max abs err vs bf16-recipe ref: {jnp.max(jnp.abs(out - ref))}")
    ref32 = mlp_reference_f32(x, w1, b1, w2, b2)
    assert jnp.allclose(out, ref32, atol=2e-2, rtol=2e-2), (
        f"max abs err vs f32 ref: {jnp.max(jnp.abs(out - ref32))}")

    # Larger, non-aligned batch: exercises batch padding, a multi-step grid
    # (2 steps of 512 rows) and the "parallel" megacore split on v7x.
    xb = jax.random.uniform(jax.random.PRNGKey(1), (1000, 20), jnp.float32)
    outb = jax.block_until_ready(fwd(xb, w1, b1, w2, b2))
    refb = mlp_reference(xb, w1, b1, w2, b2)
    assert outb.shape == (1000, 10)
    assert jnp.allclose(outb, refb, atol=1e-3, rtol=1e-3), (
        f"max abs err (B=1000): {jnp.max(jnp.abs(outb - refb))}")

    print("KERNEL_OK")
</pallas_src>

<mosaic_0001>
module attributes {stable_mosaic.version = 11 : i64} {
  func.func @mlp_kernel(%arg0: i32, %arg1: memref<16x20xf32, #tpu.memory_space<vmem>>, %arg2: memref<20x256xbf16, #tpu.memory_space<vmem>>, %arg3: memref<1x256xf32, #tpu.memory_space<vmem>>, %arg4: memref<256x10xbf16, #tpu.memory_space<vmem>>, %arg5: memref<1x10xf32, #tpu.memory_space<vmem>>, %arg6: memref<16x10xf32, #tpu.memory_space<vmem>>) attributes {dimension_semantics = [#tpu.dimension_semantics<parallel>], iteration_bounds = array<i64: 1>, scalar_prefetch = 0 : i64, scratch_operands = 0 : i64, tpu.core_type = #tpu.core_type<tc>, window_params = [{transform_indices = @transform_0, window_bounds = array<i64: 16, 20>}, {pipeline_mode = #tpu.pipeline_mode<synchronous>, transform_indices = @transform_1, window_bounds = array<i64: 20, 256>}, {pipeline_mode = #tpu.pipeline_mode<synchronous>, transform_indices = @transform_2, window_bounds = array<i64: 1, 256>}, {pipeline_mode = #tpu.pipeline_mode<synchronous>, transform_indices = @transform_3, window_bounds = array<i64: 256, 10>}, {pipeline_mode = #tpu.pipeline_mode<synchronous>, transform_indices = @transform_4, window_bounds = array<i64: 1, 10>}, {transform_indices = @transform_5, window_bounds = array<i64: 16, 10>}]} {
    %c0 = arith.constant 0 : index
    %c0_0 = arith.constant 0 : index
    %0 = vector.load %arg1[%c0, %c0_0] : memref<16x20xf32, #tpu.memory_space<vmem>>, vector<16x20xf32>
    %1 = arith.truncf %0 : vector<16x20xf32> to vector<16x20xbf16>
    %c0_1 = arith.constant 0 : index
    %c0_2 = arith.constant 0 : index
    %2 = vector.load %arg2[%c0_1, %c0_2] : memref<20x256xbf16, #tpu.memory_space<vmem>>, vector<20x256xbf16>
    %cst = arith.constant dense<0.000000e+00> : vector<16x256xf32>
    %3 = tpu.matmul %1, %2, %cst {dimension_numbers = #tpu.dot_dimension_numbers<[1], [0], [0], [1], [0, 0, 1, 1], [], []>} : vector<16x20xbf16>, vector<20x256xbf16>, vector<16x256xf32> -> vector<16x256xf32>
    %c0_3 = arith.constant 0 : index
    %c0_4 = arith.constant 0 : index
    %4 = vector.load %arg3[%c0_3, %c0_4] : memref<1x256xf32, #tpu.memory_space<vmem>>, vector<1x256xf32>
    %5 = vector.broadcast %4 : vector<1x256xf32> to vector<16x256xf32>
    %6 = arith.addf %3, %5 : vector<16x256xf32>
    %cst_5 = arith.constant 0.000000e+00 : f32
    %7 = vector.broadcast %cst_5 : f32 to vector<16x256xf32>
    %8 = arith.maximumf %6, %7 : vector<16x256xf32>
    %9 = arith.truncf %8 : vector<16x256xf32> to vector<16x256xbf16>
    %c0_6 = arith.constant 0 : index
    %c0_7 = arith.constant 0 : index
    %10 = vector.load %arg4[%c0_6, %c0_7] : memref<256x10xbf16, #tpu.memory_space<vmem>>, vector<256x10xbf16>
    %cst_8 = arith.constant dense<0.000000e+00> : vector<16x10xf32>
    %11 = tpu.matmul %9, %10, %cst_8 {dimension_numbers = #tpu.dot_dimension_numbers<[1], [0], [0], [1], [0, 0, 1, 1], [], []>} : vector<16x256xbf16>, vector<256x10xbf16>, vector<16x10xf32> -> vector<16x10xf32>
    %c0_9 = arith.constant 0 : index
    %c0_10 = arith.constant 0 : index
    %12 = vector.load %arg5[%c0_9, %c0_10] : memref<1x10xf32, #tpu.memory_space<vmem>>, vector<1x10xf32>
    %13 = vector.broadcast %12 : vector<1x10xf32> to vector<16x10xf32>
    %14 = arith.addf %11, %13 : vector<16x10xf32>
    %c0_11 = arith.constant 0 : index
    %c0_12 = arith.constant 0 : index
    %15 = vector.load %arg6[%c0_11, %c0_12] : memref<16x10xf32, #tpu.memory_space<vmem>>, vector<16x10xf32>
    tpu.vector_store %arg6[%c0_11, %c0_12], %14 {strides = array<i32>} : memref<16x10xf32, #tpu.memory_space<vmem>>, vector<16x10xf32>,
    return
  }
  func.func @transform_0(%arg0: i32) -> (i32, i32) {
    %c0_i32 = arith.constant 0 : i32
    %c0_i32_0 = arith.constant 0 : i32
    return %arg0, %c0_i32 : i32, i32
  }
  func.func @transform_1(%arg0: i32) -> (i32, i32) {
    %c0_i32 = arith.constant 0 : i32
    %c0_i32_0 = arith.constant 0 : i32
    %c0_i32_1 = arith.constant 0 : i32
    return %c0_i32, %c0_i32_0 : i32, i32
  }
  func.func @transform_2(%arg0: i32) -> (i32, i32) {
    %c0_i32 = arith.constant 0 : i32
    %c0_i32_0 = arith.constant 0 : i32
    %c0_i32_1 = arith.constant 0 : i32
    return %c0_i32, %c0_i32_0 : i32, i32
  }
  func.func @transform_3(%arg0: i32) -> (i32, i32) {
    %c0_i32 = arith.constant 0 : i32
    %c0_i32_0 = arith.constant 0 : i32
    %c0_i32_1 = arith.constant 0 : i32
    return %c0_i32, %c0_i32_0 : i32, i32
  }
  func.func @transform_4(%arg0: i32) -> (i32, i32) {
    %c0_i32 = arith.constant 0 : i32
    %c0_i32_0 = arith.constant 0 : i32
    %c0_i32_1 = arith.constant 0 : i32
    return %c0_i32, %c0_i32_0 : i32, i32
  }
  func.func @transform_5(%arg0: i32) -> (i32, i32) {
    %c0_i32 = arith.constant 0 : i32
    %c0_i32_0 = arith.constant 0 : i32
    return %arg0, %c0_i32 : i32, i32
  }
}

</mosaic_0001>

<llo_original>
// kernel: mlp_forward.1
$region0: #{mlp_forward.1}
  #allocation0 [shape = 'u32[]', space=smem, size = 0x4, offset = 0x4, fixed_abs, tag = 'smem constant byte address 0x4 - core index']
  #allocation1 [shape = 'u32[144,128]{1,0:T(1,128)}', space=vmem, size = 0x12000, scoped, tag = 'internal scratch']
  %s0 = inlined_call_operand.vmem [shape: f32[16,20], index: 0, kind: input, shape index: {}]
  %s1 = inlined_call_operand.vmem [shape: bf16[20,256], index: 1, kind: input, shape index: {}]
  %s2 = inlined_call_operand.vmem [shape: f32[1,256], index: 2, kind: input, shape index: {}]
  %s3 = inlined_call_operand.vmem [shape: bf16[256,10], index: 3, kind: input, shape index: {}]
  %s4 = inlined_call_operand.vmem [shape: f32[1,10], index: 4, kind: input, shape index: {}]
  %s5 = inlined_call_operand.vmem [shape: f32[16,10], index: 5, kind: output, shape index: {}]
  %s6 = sld [smem:[#allocation0]]
  $region30: #{mlp_forward.1} parent=0
    _
  %s8 = ssub.s32 1, %s6
  %s9 = scalar_select 0, %s8, %s6
  // Predicated region
  $region2: #{mlp_forward.1} parent=0 // pred_check
    _
  $region3: #{mlp_forward.1} parent=0 // pred_check_branch
    %11 = sbr.rel (0) target = $region5
  $region4: #{mlp_forward.1} parent=0 // pred_region
    _
  $region5: #{mlp_forward.1} parent=0 // pred_fallthru
    _
  // Predicated region
  $region6: #{mlp_forward.1} parent=0 // pred_check
    _
  $region7: #{mlp_forward.1} parent=0 // pred_check_branch
    %13 = sbr.rel (0) target = $region9
  $region8: #{mlp_forward.1} parent=0 // pred_region
    _
  $region9: #{mlp_forward.1} parent=0 // pred_fallthru
    _
  // Predicated region
  $region10: #{mlp_forward.1} parent=0 // pred_check
    _
  $region11: #{mlp_forward.1} parent=0 // pred_check_branch
    %15 = sbr.rel (0) target = $region13
  $region12: #{mlp_forward.1} parent=0 // pred_region
    _
  $region13: #{mlp_forward.1} parent=0 // pred_fallthru
    _
  // Predicated region
  $region14: #{mlp_forward.1} parent=0 // pred_check
    _
  $region15: #{mlp_forward.1} parent=0 // pred_check_branch
    %17 = sbr.rel (0) target = $region17
  $region16: #{mlp_forward.1} parent=0 // pred_region
    _
  $region17: #{mlp_forward.1} parent=0 // pred_fallthru
    _
  // Predicated region
  $region18: #{mlp_forward.1} parent=0 // pred_check
    _
  $region19: #{mlp_forward.1} parent=0 // pred_check_branch
    %19 = sbr.rel (0) target = $region21
  $region20: #{mlp_forward.1} parent=0 // pred_region
    _
  $region21: #{mlp_forward.1} parent=0 // pred_fallthru
    _
  %v21 = vld [vmem:[%s0] sm:$0xff]
  %v22 = vld [vmem:[%s0 + $0x8] sm:$0xff]
  %v23 = vpack.c.bf16 %v22, %v21
  %v24 = vld [vmem:[%s1] sm:$0xff]
  %v25 = vld [vmem:[%s1 + $0x8] sm:$0xff]
  %v26 = vld [vmem:[%s1 + $0x10] sm:$0x33]
  %v27 = vld [vmem:[%s2] sm:$0x3]
  %v29 = vlaneseq
  %v30 = vshrl.u32 %v29, 7
  %v31 = vsub.s32 0, %v30
  %v32 = vrot.slane %v27, %v31
  %v33 = vlaneseq
  %v34 = vshrl.u32 %v33, 7
  %v35 = vsub.s32 1, %v34
  %v36 = vrot.slane %v27, %v35
  %v42 = vunpack.c.l.b16 %v24
  %v43 = vunpack.c.h.b16 %v24
  %v44 = vunpack.c.l.b16 %v25
  %v45 = vunpack.c.h.b16 %v25
  %v46 = vunpack.c.l.b16 %v26
  %v47 = vunpack.c.h.b16 %v26
  %v48 = vpack.c.b16 %v44, %v42
  %v49 = vpack.c.b16 %v45, %v43
  %v50 = vpack.c.b16 %v46, %v46
  %v51 = vpack.c.b16 %v47, %v47
  %vm54 = vcmask 162816
  %v56 = vsel %vm54, %v23, 0
  %vm58 = vcmask 1041408
  %v60 = vsel %vm58, %v50, 0
  %v63 = vsel %vm58, %v51, 0
  %65 = vmatprep.subr.bf16.mxu0 %v49
  %66 = vmatpush1.bf16.msra.mxu0 %v48
  %67 = vmatprep.subr.bf16.mxu0 %v63
  %68 = vmatpush1.bf16.msra.mxu0 %v60
  %69 = vmatprep.subr.bf16.mxu0 0
  %70 = vmatpush1.bf16.msra.mxu0 0
  %71 = vmatprep.subr.bf16.mxu0 0
  %72 = vmatpush1.bf16.msra.mxu0 0
  %73 = vmatprep.subr.bf16.mxu0 0
  %74 = vmatpush1.bf16.msra.mxu0 0
  %75 = vmatprep.subr.bf16.mxu0 0
  %76 = vmatpush1.bf16.msra.mxu0 0
  %77 = vmatprep.subr.bf16.mxu0 0
  %78 = vmatpush1.bf16.msra.mxu0 0
  %79 = vmatprep.subr.bf16.mxu0 0
  %80 = vmatpush1.bf16.msra.mxu0 0
  %81 = vmatprep.subr.bf16.mxu0 0
  %82 = vmatpush1.bf16.msra.mxu0 0
  %83 = vmatprep.subr.bf16.mxu0 0
  %84 = vmatpush1.bf16.msra.mxu0 0
  %85 = vmatprep.subr.bf16.mxu0 0
  %86 = vmatpush1.bf16.msra.mxu0 0
  %87 = vmatprep.subr.bf16.mxu0 0
  %88 = vmatpush1.bf16.msra.mxu0 0
  %89 = vmatprep.subr.bf16.mxu0 0
  %90 = vmatpush1.bf16.msra.mxu0 0
  %91 = vmatprep.subr.bf16.mxu0 0
  %92 = vmatpush1.bf16.msra.mxu0 0
  %93 = vmatprep.subr.bf16.mxu0 0
  %94 = vmatpush1.bf16.msra.mxu0 0
  %95 = vmatprep.subr.bf16.mxu0 0
  %96 = vmatpush1.bf16.msra.mxu0 0
  %97 = vmatprep.mubr.bf16.mxu0 0
  %98 = vmatmul.mubr.bf16.gmra.mrb[0].mxu0 %v56
  %v99 = vpop.f32.mrb[0].mxu0
  %v100 = vadd.f32 %v32, %v99
  %v101 = vpop.f32.mrb[0].mxu0
  %v102 = vadd.f32 %v36, %v101
  %v103 = vpop.f32.mrb[0].mxu0
  %v104 = vadd.f32 %v32, %v103
  %v105 = vpop.f32.mrb[0].mxu0
  %v106 = vadd.f32 %v36, %v105
  %107 = vdwg.mxu0
  %v108 = vmax.f32 %v100, 0.0
  %v109 = vmax.f32 %v102, 0.0
  %v110 = vmax.f32 %v104, 0.0
  %v111 = vmax.f32 %v106, 0.0
  %v112 = vpack.c.bf16 %v110, %v108
  %v113 = vpack.c.bf16 %v111, %v109
  %v114 = vld [vmem:[%s3] sm:$0xf]
  %v115 = vld [vmem:[%s3 + $0x4] sm:$0xf]
  %v116 = vld [vmem:[%s3 + $0x8] sm:$0xf]
  %v117 = vld [vmem:[%s3 + $0xc] sm:$0xf]
  %v118 = vld [vmem:[%s3 + $0x10] sm:$0xf]
  %v119 = vld [vmem:[%s3 + $0x14] sm:$0xf]
  %v120 = vld [vmem:[%s3 + $0x18] sm:$0xf]
  %v121 = vld [vmem:[%s3 + $0x1c] sm:$0xf]
  %v122 = vld [vmem:[%s3 + $0x20] sm:$0xf]
  %v123 = vld [vmem:[%s3 + $0x24] sm:$0xf]
  %v124 = vld [vmem:[%s3 + $0x28] sm:$0xf]
  %v125 = vld [vmem:[%s3 + $0x2c] sm:$0xf]
  %v126 = vld [vmem:[%s3 + $0x30] sm:$0xf]
  %v127 = vld [vmem:[%s3 + $0x34] sm:$0xf]
  %v128 = vld [vmem:[%s3 + $0x38] sm:$0xf]
  %v129 = vld [vmem:[%s3 + $0x3c] sm:$0xf]
  %v130 = vld [vmem:[%s3 + $0x40] sm:$0xf]
  %v131 = vld [vmem:[%s3 + $0x44] sm:$0xf]
  %v132 = vld [vmem:[%s3 + $0x48] sm:$0xf]
  %v133 = vld [vmem:[%s3 + $0x4c] sm:$0xf]
  %v134 = vld [vmem:[%s3 + $0x50] sm:$0xf]
  %v135 = vld [vmem:[%s3 + $0x54] sm:$0xf]
  %v136 = vld [vmem:[%s3 + $0x58] sm:$0xf]
  %v137 = vld [vmem:[%s3 + $0x5c] sm:$0xf]
  %v138 = vld [vmem:[%s3 + $0x60] sm:$0xf]
  %v139 = vld [vmem:[%s3 + $0x64] sm:$0xf]
  %v140 = vld [vmem:[%s3 + $0x68] sm:$0xf]
  %v141 = vld [vmem:[%s3 + $0x6c] sm:$0xf]
  %v142 = vld [vmem:[%s3 + $0x70] sm:$0xf]
  %v143 = vld [vmem:[%s3 + $0x74] sm:$0xf]
  %v144 = vld [vmem:[%s3 + $0x78] sm:$0xf]
  %v145 = vld [vmem:[%s3 + $0x7c] sm:$0xf]
  %v146 = vld [vmem:[%s4] sm:$0x1]
  %v148 = vlaneseq
  %v149 = vshrl.u32 %v148, 7
  %v150 = vsub.s32 0, %v149
  %v151 = vrot.slane %v146, %v150
  %v185 = vunpack.c.l.b16 %v114
  %v186 = vunpack.c.l.b16 %v115
  %v187 = vunpack.c.l.b16 %v116
  %v188 = vunpack.c.l.b16 %v117
  %v189 = vunpack.c.l.b16 %v118
  %v190 = vunpack.c.l.b16 %v119
  %v191 = vunpack.c.l.b16 %v120
  %v192 = vunpack.c.l.b16 %v121
  %v193 = vunpack.c.l.b16 %v122
  %v194 = vunpack.c.l.b16 %v123
  %v195 = vunpack.c.l.b16 %v124
  %v196 = vunpack.c.l.b16 %v125
  %v197 = vunpack.c.l.b16 %v126
  %v198 = vunpack.c.l.b16 %v127
  %v199 = vunpack.c.l.b16 %v128
  %v200 = vunpack.c.l.b16 %v129
  %v201 = vunpack.c.l.b16 %v130
  %v202 = vunpack.c.l.b16 %v131
  %v203 = vunpack.c.l.b16 %v132
  %v204 = vunpack.c.l.b16 %v133
  %v205 = vunpack.c.l.b16 %v134
  %v206 = vunpack.c.l.b16 %v135
  %v207 = vunpack.c.l.b16 %v136
  %v208 = vunpack.c.l.b16 %v137
  %v209 = vunpack.c.l.b16 %v138
  %v210 = vunpack.c.l.b16 %v139
  %v211 = vunpack.c.l.b16 %v140
  %v212 = vunpack.c.l.b16 %v141
  %v213 = vunpack.c.l.b16 %v142
  %v214 = vunpack.c.l.b16 %v143
  %v215 = vunpack.c.l.b16 %v144
  %v216 = vunpack.c.l.b16 %v145
  %v217 = vpack.c.b16 %v186, %v185
  %v218 = vpack.c.b16 %v188, %v187
  %v219 = vpack.c.b16 %v190, %v189
  %v220 = vpack.c.b16 %v192, %v191
  %v221 = vpack.c.b16 %v194, %v193
  %v222 = vpack.c.b16 %v196, %v195
  %v223 = vpack.c.b16 %v198, %v197
  %v224 = vpack.c.b16 %v200, %v199
  %v225 = vpack.c.b16 %v202, %v201
  %v226 = vpack.c.b16 %v204, %v203
  %v227 = vpack.c.b16 %v206, %v205
  %v228 = vpack.c.b16 %v208, %v207
  %v229 = vpack.c.b16 %v210, %v209
  %v230 = vpack.c.b16 %v212, %v211
  %v231 = vpack.c.b16 %v214, %v213
  %v232 = vpack.c.b16 %v216, %v215
  %249 = vmatprep.subr.bf16.mxu0 0
  %250 = vmatpush1.bf16.msra.mxu0 %v217
  %251 = vmatprep.subr.bf16.mxu0 0
  %252 = vmatpush1.bf16.msra.mxu0 %v218
  %253 = vmatprep.subr.bf16.mxu0 0
  %254 = vmatpush1.bf16.msra.mxu0 %v219
  %255 = vmatprep.subr.bf16.mxu0 0
  %256 = vmatpush1.bf16.msra.mxu0 %v220
  %257 = vmatprep.subr.bf16.mxu0 0
  %258 = vmatpush1.bf16.msra.mxu0 %v221
  %259 = vmatprep.subr.bf16.mxu0 0
  %260 = vmatpush1.bf16.msra.mxu0 %v222
  %261 = vmatprep.subr.bf16.mxu0 0
  %262 = vmatpush1.bf16.msra.mxu0 %v223
  %263 = vmatprep.subr.bf16.mxu0 0
  %264 = vmatpush1.bf16.msra.mxu0 %v224
  %265 = vmatprep.subr.bf16.mxu0 0
  %266 = vmatpush1.bf16.msra.mxu0 %v225
  %267 = vmatprep.subr.bf16.mxu0 0
  %268 = vmatpush1.bf16.msra.mxu0 %v226
  %269 = vmatprep.subr.bf16.mxu0 0
  %270 = vmatpush1.bf16.msra.mxu0 %v227
  %271 = vmatprep.subr.bf16.mxu0 0
  %272 = vmatpush1.bf16.msra.mxu0 %v228
  %273 = vmatprep.subr.bf16.mxu0 0
  %274 = vmatpush1.bf16.msra.mxu0 %v229
  %275 = vmatprep.subr.bf16.mxu0 0
  %276 = vmatpush1.bf16.msra.mxu0 %v230
  %277 = vmatprep.subr.bf16.mxu0 0
  %278 = vmatpush1.bf16.msra.mxu0 %v231
  %279 = vmatprep.subr.bf16.mxu0 0
  %280 = vmatpush1.bf16.msra.mxu0 %v232
  %281 = vmatprep.mubr.bf16.mxu0 %v113
  %282 = vmatmul.mubr.bf16.gmra.mrb[0].mxu0 %v112
  %v283 = vpop.f32.mrb[0].mxu0
  %v284 = vadd.f32 %v151, %v283
  %v285 = vpop.f32.mrb[0].mxu0
  %v286 = vpop.f32.mrb[0].mxu0
  %v287 = vadd.f32 %v151, %v286
  %v288 = vpop.f32.mrb[0].mxu0
  %289 = vdwg.mxu0
  %vm290 = vcmask 80896
  %291 = vst.msk [vmem:[%s5] sm:$0xff] %vm290, %v284
  %292 = vst.msk [vmem:[%s5 + $0x8] sm:$0xff] %vm290, %v287
  // Predicated region
  $region22: #{mlp_forward.1} parent=0 // pred_check
    _
  $region23: #{mlp_forward.1} parent=0 // pred_check_branch
    %294 = sbr.rel (0) target = $region25
  $region24: #{mlp_forward.1} parent=0 // pred_region
    _
  $region25: #{mlp_forward.1} parent=0 // pred_fallthru
    _
  // Predicated region
  $region26: #{mlp_forward.1} parent=0 // pred_check
    _
  $region27: #{mlp_forward.1} parent=0 // pred_check_branch
    %296 = sbr.rel (0) target = $region29
  $region28: #{mlp_forward.1} parent=0 // pred_region
    _
  $region29: #{mlp_forward.1} parent=0 // pred_fallthru
    _

</llo_original>
